<compile_context>
chip_gen: v7x
topology: tpu7x:2x2x1
jax: 0.10.0
libtpu: 0.0.40
codegen_flags: <defaults>
</compile_context>

<pallas_src>
import functools
import math

import jax
import jax.numpy as jnp
from jax.experimental import pallas as pl
from jax.experimental.pallas import tpu as pltpu


def gate_kernel(x_ref, wt_ref, b_ref, o_ref, *, out_scale):
    # x_ref : (TM, d_in)   row-block of flattened inputs
    # wt_ref: (d_in, d_out) = (W / t)^T   (pre-transposed, pre-scaled)
    # b_ref : (1, d_out)   = b / t
    z = jnp.dot(x_ref[...], wt_ref[...], preferred_element_type=jnp.float32)
    z = z + b_ref[...]
    # Numerically-stable softmax over the last (lane) dim.
    z = z - jnp.max(z, axis=-1, keepdims=True)
    e = jnp.exp(z)
    p = e / jnp.sum(e, axis=-1, keepdims=True)
    o_ref[...] = (out_scale * p).astype(o_ref.dtype)


def gate_forward(gate_input, weight, bias, *, d_output, beta=1.0,
                 block_rows=128):
    """gate_input: (..., d_input); weight: (d_output, d_input) (PyTorch layout);
    bias: (d_output,).  Returns d_output * softmax((x @ W^T + b)/beta, -1)."""
    *lead, d_in = gate_input.shape
    d_out = weight.shape[0]
    assert weight.shape == (d_out, d_in)
    assert bias.shape == (d_out,)

    # ---- Flatten all leading dims into rows (no HBM transpose needed). ----
    m = 1
    for s in lead:
        m *= s
    x2d = gate_input.reshape(m, d_in).astype(jnp.float32)

    # Row-block size: multiple of 8 sublanes, capped at block_rows.
    tm = min(block_rows, max(8, ((m + 7) // 8) * 8))
    m_pad = ((m + tm - 1) // tm) * tm
    if m_pad != m:
        x2d = jnp.pad(x2d, ((0, m_pad - m), (0, 0)))

    # ---- Hoist layout work out of the kernel: transpose W and fold 1/t. ----
    wt = (weight.T / beta).astype(jnp.float32)          # (d_in, d_out)
    b = (bias / beta).reshape(1, d_out).astype(jnp.float32)

    kernel = functools.partial(gate_kernel, out_scale=float(d_output))

    out2d = pl.pallas_call(
        kernel,
        out_shape=jax.ShapeDtypeStruct((m_pad, d_out), jnp.float32),
        grid_spec=pltpu.PrefetchScalarGridSpec(
            num_scalar_prefetch=0,
            grid=(m_pad // tm,),
            in_specs=[
                pl.BlockSpec((tm, d_in), lambda i: (i, 0)),       # x rows
                pl.BlockSpec((d_in, d_out), lambda i: (0, 0)),    # W^T / t
                pl.BlockSpec((1, d_out), lambda i: (0, 0)),       # b / t
            ],
            out_specs=pl.BlockSpec((tm, d_out), lambda i: (i, 0)),
        ),
        compiler_params=pltpu.CompilerParams(
            dimension_semantics=("parallel",)),
    )(x2d, wt, b)

    return out2d[:m].reshape(*lead, d_out)


def gate_reference(gate_input, weight, bias, *, d_output, beta=1.0):
    """Pure-JAX reference mirroring the PyTorch Gate.forward."""
    z = gate_input @ weight.T + bias
    return d_output * jax.nn.softmax(z / beta, axis=-1)


if __name__ == "__main__":
    # Small shapes consistent with the module: (batch, seq, d_input) input,
    # lane-dense d_output.
    N, T, D_IN, D_OUT = 8, 32, 64, 128
    BETA = 0.7

    key = jax.random.PRNGKey(0)
    kx, kw, kb = jax.random.split(key, 3)

    x = jax.random.normal(kx, (N, T, D_IN), jnp.float32)
    s = 1.0 / math.sqrt(D_IN)
    weight = jax.random.uniform(kw, (D_OUT, D_IN), jnp.float32, -s, s)
    bias = jax.random.uniform(kb, (D_OUT,), jnp.float32, -s, s)

    out = jax.block_until_ready(
        gate_forward(x, weight, bias, d_output=D_OUT, beta=BETA))
    ref = jax.block_until_ready(
        gate_reference(x, weight, bias, d_output=D_OUT, beta=BETA))

    assert out.shape == (N, T, D_OUT)
    assert jnp.allclose(out, ref, atol=1e-4, rtol=1e-4), (
        float(jnp.max(jnp.abs(out - ref))))
    print("KERNEL_OK")
</pallas_src>

<mosaic_0001>
module attributes {stable_mosaic.version = 11 : i64} {
  func.func @gate_kernel(%arg0: i32, %arg1: memref<128x64xf32, #tpu.memory_space<vmem>>, %arg2: memref<64x128xf32, #tpu.memory_space<vmem>>, %arg3: memref<1x128xf32, #tpu.memory_space<vmem>>, %arg4: memref<128x128xf32, #tpu.memory_space<vmem>>) attributes {dimension_semantics = [#tpu.dimension_semantics<parallel>], iteration_bounds = array<i64: 2>, scalar_prefetch = 0 : i64, scratch_operands = 0 : i64, tpu.core_type = #tpu.core_type<tc>, window_params = [{transform_indices = @transform_0, window_bounds = array<i64: 128, 64>}, {pipeline_mode = #tpu.pipeline_mode<synchronous>, transform_indices = @transform_1, window_bounds = array<i64: 64, 128>}, {pipeline_mode = #tpu.pipeline_mode<synchronous>, transform_indices = @transform_2, window_bounds = array<i64: 1, 128>}, {transform_indices = @transform_3, window_bounds = array<i64: 128, 128>}]} {
    %c0 = arith.constant 0 : index
    %c0_0 = arith.constant 0 : index
    %0 = vector.load %arg1[%c0, %c0_0] : memref<128x64xf32, #tpu.memory_space<vmem>>, vector<128x64xf32>
    %c0_1 = arith.constant 0 : index
    %c0_2 = arith.constant 0 : index
    %1 = vector.load %arg2[%c0_1, %c0_2] : memref<64x128xf32, #tpu.memory_space<vmem>>, vector<64x128xf32>
    %cst = arith.constant dense<0.000000e+00> : vector<128x128xf32>
    %2 = tpu.matmul %0, %1, %cst {dimension_numbers = #tpu.dot_dimension_numbers<[1], [0], [0], [1], [0, 0, 1, 1], [], []>} : vector<128x64xf32>, vector<64x128xf32>, vector<128x128xf32> -> vector<128x128xf32>
    %c0_3 = arith.constant 0 : index
    %c0_4 = arith.constant 0 : index
    %3 = vector.load %arg3[%c0_3, %c0_4] : memref<1x128xf32, #tpu.memory_space<vmem>>, vector<1x128xf32>
    %4 = vector.broadcast %3 : vector<1x128xf32> to vector<128x128xf32>
    %5 = arith.addf %2, %4 : vector<128x128xf32>
    %cst_5 = arith.constant dense<0xFF800000> : vector<128xf32>
    %6 = vector.multi_reduction <maximumf>, %5, %cst_5 [1] : vector<128x128xf32> to vector<128xf32>
    %7 = vector.shape_cast %6 : vector<128xf32> to vector<128x1xf32>
    %8 = vector.broadcast %7 : vector<128x1xf32> to vector<128x128xf32>
    %9 = arith.subf %5, %8 : vector<128x128xf32>
    %10 = math.exp %9 : vector<128x128xf32>
    %cst_6 = arith.constant dense<0.000000e+00> : vector<128xf32>
    %11 = vector.multi_reduction <add>, %10, %cst_6 [1] : vector<128x128xf32> to vector<128xf32>
    %12 = vector.shape_cast %11 : vector<128xf32> to vector<128x1xf32>
    %13 = vector.broadcast %12 : vector<128x1xf32> to vector<128x128xf32>
    %14 = arith.divf %10, %13 : vector<128x128xf32>
    %cst_7 = arith.constant 1.280000e+02 : f32
    %15 = vector.broadcast %cst_7 : f32 to vector<128x128xf32>
    %16 = arith.mulf %15, %14 : vector<128x128xf32>
    %c0_8 = arith.constant 0 : index
    %c0_9 = arith.constant 0 : index
    %17 = vector.load %arg4[%c0_8, %c0_9] : memref<128x128xf32, #tpu.memory_space<vmem>>, vector<128x128xf32>
    tpu.vector_store %arg4[%c0_8, %c0_9], %16 {strides = array<i32>} : memref<128x128xf32, #tpu.memory_space<vmem>>, vector<128x128xf32>,
    return
  }
  func.func @transform_0(%arg0: i32) -> (i32, i32) {
    %c0_i32 = arith.constant 0 : i32
    %c0_i32_0 = arith.constant 0 : i32
    return %arg0, %c0_i32 : i32, i32
  }
  func.func @transform_1(%arg0: i32) -> (i32, i32) {
    %c0_i32 = arith.constant 0 : i32
    %c0_i32_0 = arith.constant 0 : i32
    %c0_i32_1 = arith.constant 0 : i32
    return %c0_i32, %c0_i32_0 : i32, i32
  }
  func.func @transform_2(%arg0: i32) -> (i32, i32) {
    %c0_i32 = arith.constant 0 : i32
    %c0_i32_0 = arith.constant 0 : i32
    %c0_i32_1 = arith.constant 0 : i32
    return %c0_i32, %c0_i32_0 : i32, i32
  }
  func.func @transform_3(%arg0: i32) -> (i32, i32) {
    %c0_i32 = arith.constant 0 : i32
    %c0_i32_0 = arith.constant 0 : i32
    return %arg0, %c0_i32 : i32, i32
  }
}

</mosaic_0001>

<llo_original>
// kernel: tpu_custom_call.1
$region0: #{tpu_custom_call.1}
  #allocation0 [shape = 'u32[]', space=smem, size = 0x4, offset = 0x4, fixed_abs, tag = 'smem constant byte address 0x4 - core index']
  #allocation1 [shape = 'u32[144,128]{1,0:T(1,128)}', space=vmem, size = 0x12000, scoped, tag = 'internal scratch']
  %s0 = inlined_call_operand.vmem [shape: f32[256,64], index: 0, kind: input, shape index: {}]
  %s1 = inlined_call_operand.vmem [shape: f32[64,128], index: 1, kind: input, shape index: {}]
  %s2 = inlined_call_operand.vmem [shape: f32[1,128], index: 2, kind: input, shape index: {}]
  %s3 = inlined_call_operand.hbm [shape: f32[256,128], index: 3, kind: output, shape index: {}]
  %s4 = sld [smem:[#allocation0]]
  $region45: #{tpu_custom_call.1} parent=0
    _
  %s6 = ssub.s32 1, %s4
  %s7 = scalar_select 0, %s6, %s4
  $region1: #{tpu_custom_call.1} parent=0
    #allocation2 [shape = 'u8[131072]{0}', space=vmem, size = 0x20000, scoped, tag = 'output window, operand 0']
    #allocation3 [shape = 's32[2]{0}', space=sflag, size = 0x8, scoped, tag = 'scoped memory for tpu_custom_call.1']
    %8 = vsyncpa [#allocation3], 0
    %s9 = scalar_lea.sflag [#allocation3], 1
    %10 = vsyncpa %s9, 0
    loop: start=0, step=1, limit=4
    $region2: #{tpu_custom_call.1} parent=1 // loop_pre_header
      _
    $region3: #{tpu_custom_call.1} parent=1 // loop_header
      %s12 = sphi 0, %s16
      %p13 = scmp.ge.s32.totalorder %s12, 4
      %s22 = sphi 0, %s24
      %s25 = sphi 0, %s22
      %s26 = sphi 0, %s25
      %s42 = sphi 0, %s26
      %s46 = sphi 0, %s46
      %s48 = sphi 0, %s46
      %s49 = sphi 0, %s48
      %s63 = sphi 0, %s49
      %s67 = sphi 0, %s67
      %s69 = sphi 0, %s67
      %s70 = sphi 0, %s69
      %s84 = sphi 0, %s70
      %s90 = sphi 0, %s92
      %s93 = sphi 0, %s90
      %s94 = sphi 0, %s93
      %s110 = sphi 0, %s94
    $region4: #{tpu_custom_call.1} parent=1 // loop_header_branch
      %15 = sbr.rel (%p13) target = $region8
    $region5: #{tpu_custom_call.1} parent=1 // loop_body
      %s17 = ssub.s32 %s12, 1
      %s18 = ssub.s32 %s12, 2
      %s19 = sadd.s32 %s12, 1
      %s20 = ssub.s32 %s12, %s19
      %p21 = scmp.eq.s32.totalorder %s20, 0
      %s23 = sadd.s32 %s22, 1
      %s24 = scalar_select %p21, %s22, %s23
      %p27 = pneg %p21
      %p28 = scmp.eq.s32.totalorder %s12, 1
      %p29 = por %p27, %p28
      %p30 = scmp.ne.s32.totalorder %s22, %s25
      %p31 = scmp.eq.s32.totalorder %s12, 0
      %p32 = por %p30, %p31
      %p33 = scmp.ne.s32.totalorder %s22, %s25
      %p34 = scmp.eq.s32.totalorder %s17, 1
      %p35 = por %p33, %p34
      %p36 = scmp.ne.s32.totalorder %s25, %s26
      %p37 = scmp.eq.s32.totalorder %s17, 0
      %p38 = por %p36, %p37
      %p39 = scmp.ne.s32.totalorder %s25, %s26
      %p40 = scmp.eq.s32.totalorder %s18, 1
      %p41 = por %p39, %p40
      %p43 = scmp.ne.s32.totalorder %s26, %s42
      %p44 = scmp.eq.s32.totalorder %s18, 0
      %p45 = por %p43, %p44
      %s47 = sadd.s32 %s46, 1
      %p50 = scmp.eq.s32.totalorder %s12, 1
      %p51 = scmp.ne.s32.totalorder %s46, %s48
      %p52 = scmp.eq.s32.totalorder %s12, 0
      %p53 = por %p51, %p52
      %p54 = scmp.ne.s32.totalorder %s46, %s48
      %p55 = scmp.eq.s32.totalorder %s17, 1
      %p56 = por %p54, %p55
      %p57 = scmp.ne.s32.totalorder %s48, %s49
      %p58 = scmp.eq.s32.totalorder %s17, 0
      %p59 = por %p57, %p58
      %p60 = scmp.ne.s32.totalorder %s48, %s49
      %p61 = scmp.eq.s32.totalorder %s18, 1
      %p62 = por %p60, %p61
      %p64 = scmp.ne.s32.totalorder %s49, %s63
      %p65 = scmp.eq.s32.totalorder %s18, 0
      %p66 = por %p64, %p65
      %s68 = sadd.s32 %s67, 1
      %p71 = scmp.eq.s32.totalorder %s12, 1
      %p72 = scmp.ne.s32.totalorder %s67, %s69
      %p73 = scmp.eq.s32.totalorder %s12, 0
      %p74 = por %p72, %p73
      %p75 = scmp.ne.s32.totalorder %s67, %s69
      %p76 = scmp.eq.s32.totalorder %s17, 1
      %p77 = por %p75, %p76
      %p78 = scmp.ne.s32.totalorder %s69, %s70
      %p79 = scmp.eq.s32.totalorder %s17, 0
      %p80 = por %p78, %p79
      %p81 = scmp.ne.s32.totalorder %s69, %s70
      %p82 = scmp.eq.s32.totalorder %s18, 1
      %p83 = por %p81, %p82
      %p85 = scmp.ne.s32.totalorder %s70, %s84
      %p86 = scmp.eq.s32.totalorder %s18, 0
      %p87 = por %p85, %p86
      %s88 = ssub.s32 %s12, %s19
      %p89 = scmp.eq.s32.totalorder %s88, 0
      %s91 = sadd.s32 %s90, 1
      %s92 = scalar_select %p89, %s90, %s91
      %p95 = pneg %p89
      %p96 = scmp.eq.s32.totalorder %s12, 1
      %p97 = por %p95, %p96
      %p98 = scmp.ne.s32.totalorder %s90, %s93
      %p99 = scmp.eq.s32.totalorder %s12, 0
      %p100 = por %p98, %p99
      %p101 = scmp.ne.s32.totalorder %s90, %s93
      %p102 = scmp.eq.s32.totalorder %s17, 1
      %p103 = por %p101, %p102
      %p104 = scmp.ne.s32.totalorder %s93, %s94
      %p105 = scmp.eq.s32.totalorder %s17, 0
      %p106 = por %p104, %p105
      %p107 = scmp.ne.s32.totalorder %s93, %s94
      %p108 = scmp.eq.s32.totalorder %s18, 1
      %p109 = por %p107, %p108
      %p111 = scmp.ne.s32.totalorder %s94, %s110
      %p112 = scmp.eq.s32.totalorder %s18, 0
      %p113 = por %p111, %p112
      %p114 = scmp.le.s32.totalorder 1, %s12
      %p115 = scmp.lt.s32.totalorder %s12, 3
      %p116 = pnand %p114, %p115
      %p117 = pneg %p116
      // Predicated region
      $region9: #{tpu_custom_call.1} parent=5 // pred_check
        _
      $region10: #{tpu_custom_call.1} parent=5 // pred_check_branch
        %119 = sbr.rel (%p116) target = $region12
      $region11: #{tpu_custom_call.1} parent=5 // pred_region
        %s120 = ssub.s32 %s12, 1
        // Predicated region
        $region13: #{tpu_custom_call.1} parent=11 // pred_check
          %p121 = pneg %p59
        $region14: #{tpu_custom_call.1} parent=11 // pred_check_branch
          %123 = sbr.rel (%p121) target = $region16
        $region15: #{tpu_custom_call.1} parent=11 // pred_region
          _
        $region16: #{tpu_custom_call.1} parent=11 // pred_fallthru
          _
        // Predicated region
        $region17: #{tpu_custom_call.1} parent=11 // pred_check
          %p124 = pneg %p80
        $region18: #{tpu_custom_call.1} parent=11 // pred_check_branch
          %126 = sbr.rel (%p124) target = $region20
        $region19: #{tpu_custom_call.1} parent=11 // pred_region
          _
        $region20: #{tpu_custom_call.1} parent=11 // pred_fallthru
          _
      $region12: #{tpu_custom_call.1} parent=5 // pred_fallthru
        _
      %p127 = scmp.lt.s32.totalorder %s12, 2
      // Predicated region
      $region21: #{tpu_custom_call.1} parent=5 // pred_check
        %p128 = pneg %p127
      $region22: #{tpu_custom_call.1} parent=5 // pred_check_branch
        %130 = sbr.rel (%p128) target = $region24
      $region23: #{tpu_custom_call.1} parent=5 // pred_region
        // Predicated region
        $region25: #{tpu_custom_call.1} parent=23 // pred_check
          %p131 = pneg %p32
        $region26: #{tpu_custom_call.1} parent=23 // pred_check_branch
          %133 = sbr.rel (%p131) target = $region28
        $region27: #{tpu_custom_call.1} parent=23 // pred_region
          %s134 = smul.u32 16, %s12
          %p135 = scmp.lt.s32.totalorder %s134, 31
          %s136 = scalar_select %p135, %s134, 31
          %s137 = smul.addr %s136, 8
          %s138 = scalar_lea.vmem %s0, %s137
          %s139 = smul.u32 16, %s12
        $region28: #{tpu_custom_call.1} parent=23 // pred_fallthru
          _
      $region24: #{tpu_custom_call.1} parent=5 // pred_fallthru
        _
      %p140 = scmp.le.s32.totalorder 1, %s12
      %p141 = scmp.lt.s32.totalorder %s12, 3
      %p142 = pnand %p140, %p141
      %p143 = pneg %p142
      // Predicated region
      $region29: #{tpu_custom_call.1} parent=5 // pred_check
        _
      $region30: #{tpu_custom_call.1} parent=5 // pred_check_branch
        %145 = sbr.rel (%p142) target = $region32
      $region31: #{tpu_custom_call.1} parent=5 // pred_region
        %s146 = ssub.s32 %s12, 1
        %s147 = smul.u32 16, %s17
        %p148 = scmp.lt.s32.totalorder %s147, 31
        %s149 = scalar_select %p148, %s147, 31
        %s150 = smul.addr %s149, 8
        %s151 = scalar_lea.vmem %s0, %s150
        %p152 = pneg %p38
        %p153 = pneg %p35
        %p154 = pneg %p59
        %p155 = pneg %p56
        %p156 = pneg %p80
        %p157 = pneg %p77
        %p158 = pneg %p106
        %p159 = pneg %p103
        %s160 = sand.u32 %s93, 1
        %s161 = scalar_lea.sflag [#allocation3], %s160
        %s162 = sand.u32 %s93, 1
        %s163 = smul.addr %s162, 128
        %s164 = scalar_lea.vmem [#allocation2], %s163
        %s165 = smul.u32 16, %s17
        %p166 = scmp.lt.s32.totalorder %s165, 31
        %s167 = scalar_select %p166, %s165, 31
        %s168 = smul.addr %s167, 8
        %s169 = scalar_lea.vmem %s0, %s168
        %s170 = smul.u32 16, %s17
        %s171 = smul.u32 16, %s17
        %v172 = vld [vmem:[%s169] sm:$0xff]
        %v173 = vld [vmem:[%s169 + $0x8] sm:$0xff]
        %v174 = vld [vmem:[%s169 + $0x10] sm:$0xff]
        %v175 = vld [vmem:[%s169 + $0x18] sm:$0xff]
        %v176 = vld [vmem:[%s169 + $0x20] sm:$0xff]
        %v177 = vld [vmem:[%s169 + $0x28] sm:$0xff]
        %v178 = vld [vmem:[%s169 + $0x30] sm:$0xff]
        %v179 = vld [vmem:[%s169 + $0x38] sm:$0xff]
        %v180 = vld [vmem:[%s169 + $0x40] sm:$0xff]
        %v181 = vld [vmem:[%s169 + $0x48] sm:$0xff]
        %v182 = vld [vmem:[%s169 + $0x50] sm:$0xff]
        %v183 = vld [vmem:[%s169 + $0x58] sm:$0xff]
        %v184 = vld [vmem:[%s169 + $0x60] sm:$0xff]
        %v185 = vld [vmem:[%s169 + $0x68] sm:$0xff]
        %v186 = vld [vmem:[%s169 + $0x70] sm:$0xff]
        %v187 = vld [vmem:[%s169 + $0x78] sm:$0xff]
        %v188 = vld [vmem:[%s1] sm:$0xff]
        %v189 = vld [vmem:[%s1 + $0x8] sm:$0xff]
        %v190 = vld [vmem:[%s1 + $0x10] sm:$0xff]
        %v191 = vld [vmem:[%s1 + $0x18] sm:$0xff]
        %v192 = vld [vmem:[%s1 + $0x20] sm:$0xff]
        %v193 = vld [vmem:[%s1 + $0x28] sm:$0xff]
        %v194 = vld [vmem:[%s1 + $0x30] sm:$0xff]
        %v195 = vld [vmem:[%s1 + $0x38] sm:$0xff]
        %v196 = vld [vmem:[%s2] sm:$0x1]
        %v198 = vlaneseq
        %v199 = vshrl.u32 %v198, 7
        %v200 = vsub.s32 0, %v199
        %v201 = vrot.slane %v196, %v200
        %vm203 = vcmask 523264
        %v205 = vsel %vm203, %v172, 0
        %v208 = vsel %vm203, %v173, 0
        %v211 = vsel %vm203, %v174, 0
        %v214 = vsel %vm203, %v175, 0
        %v217 = vsel %vm203, %v176, 0
        %v220 = vsel %vm203, %v177, 0
        %v223 = vsel %vm203, %v178, 0
        %v226 = vsel %vm203, %v179, 0
        %v229 = vsel %vm203, %v180, 0
        %v232 = vsel %vm203, %v181, 0
        %v235 = vsel %vm203, %v182, 0
        %v238 = vsel %vm203, %v183, 0
        %v241 = vsel %vm203, %v184, 0
        %v244 = vsel %vm203, %v185, 0
        %v247 = vsel %vm203, %v186, 0
        %v250 = vsel %vm203, %v187, 0
        %252 = vmatprep.subr.mxu0 0.0
        %253 = vmatpush1.msra.mxu0 %v188
        %254 = vmatprep.subr.mxu0 0.0
        %255 = vmatpush1.msra.mxu0 %v189
        %256 = vmatprep.subr.mxu0 0.0
        %257 = vmatpush1.msra.mxu0 %v190
        %258 = vmatprep.subr.mxu0 0.0
        %259 = vmatpush1.msra.mxu0 %v191
        %260 = vmatprep.subr.mxu0 0.0
        %261 = vmatpush1.msra.mxu0 %v192
        %262 = vmatprep.subr.mxu0 0.0
        %263 = vmatpush1.msra.mxu0 %v193
        %264 = vmatprep.subr.mxu0 0.0
        %265 = vmatpush1.msra.mxu0 %v194
        %266 = vmatprep.subr.mxu0 0.0
        %267 = vmatpush1.msra.mxu0 %v195
        %268 = vmatprep.subr.mxu0 0.0
        %269 = vmatpush1.msra.mxu0 0.0
        %270 = vmatprep.subr.mxu0 0.0
        %271 = vmatpush1.msra.mxu0 0.0
        %272 = vmatprep.subr.mxu0 0.0
        %273 = vmatpush1.msra.mxu0 0.0
        %274 = vmatprep.subr.mxu0 0.0
        %275 = vmatpush1.msra.mxu0 0.0
        %276 = vmatprep.subr.mxu0 0.0
        %277 = vmatpush1.msra.mxu0 0.0
        %278 = vmatprep.subr.mxu0 0.0
        %279 = vmatpush1.msra.mxu0 0.0
        %280 = vmatprep.subr.mxu0 0.0
        %281 = vmatpush1.msra.mxu0 0.0
        %282 = vmatprep.subr.mxu0 0.0
        %283 = vmatpush1.msra.mxu0 0.0
        %284 = vmatprep.subr.mxu0 0.0
        %285 = vmatpush1.msra.mxu0 0.0
        %286 = vmatprep.subr.mxu0 0.0
        %287 = vmatpush1.msra.mxu0 0.0
        %288 = vmatprep.subr.mxu0 0.0
        %289 = vmatpush1.msra.mxu0 0.0
        %290 = vmatprep.subr.mxu0 0.0
        %291 = vmatpush1.msra.mxu0 0.0
        %292 = vmatprep.subr.mxu0 0.0
        %293 = vmatpush1.msra.mxu0 0.0
        %294 = vmatprep.subr.mxu0 0.0
        %295 = vmatpush1.msra.mxu0 0.0
        %296 = vmatprep.subr.mxu0 0.0
        %297 = vmatpush1.msra.mxu0 0.0
        %298 = vmatprep.subr.mxu0 0.0
        %299 = vmatpush1.msra.mxu0 0.0
        %300 = vmatprep.subr.mxu0 0.0
        %301 = vmatpush1.msra.mxu0 0.0
        %302 = vmatprep.subr.mxu0 0.0
        %303 = vmatpush1.msra.mxu0 0.0
        %304 = vmatprep.subr.mxu0 0.0
        %305 = vmatpush1.msra.mxu0 0.0
        %306 = vmatprep.subr.mxu0 0.0
        %307 = vmatpush1.msra.mxu0 0.0
        %308 = vmatprep.subr.mxu0 0.0
        %309 = vmatpush1.msra.mxu0 0.0
        %310 = vmatprep.subr.mxu0 0.0
        %311 = vmatpush1.msra.mxu0 0.0
        %312 = vmatprep.subr.mxu0 0.0
        %313 = vmatpush1.msra.mxu0 0.0
        %314 = vmatprep.subr.mxu0 0.0
        %315 = vmatpush1.msra.mxu0 0.0
        %316 = vmatprep.mubr.f32.mxu0 0.0
        %317 = vmatmul.mubr.f32.gmra.mrb[0].mxu0 %v205
        %v318 = vpop.f32.mrb[0].mxu0
        %v319 = vadd.f32 %v201, %v318
        %v320 = vpop.f32.mrb[0].mxu0
        %321 = vmatprep.mubr.f32.mxu0 0.0
        %322 = vmatmul.mubr.f32.gmra.mrb[0].mxu0 %v208
        %v323 = vpop.f32.mrb[0].mxu0
        %v324 = vadd.f32 %v201, %v323
        %v325 = vpop.f32.mrb[0].mxu0
        %326 = vmatprep.mubr.f32.mxu0 0.0
        %327 = vmatmul.mubr.f32.gmra.mrb[0].mxu0 %v211
        %v328 = vpop.f32.mrb[0].mxu0
        %v329 = vadd.f32 %v201, %v328
        %v330 = vpop.f32.mrb[0].mxu0
        %331 = vmatprep.mubr.f32.mxu0 0.0
        %332 = vmatmul.mubr.f32.gmra.mrb[0].mxu0 %v214
        %v333 = vpop.f32.mrb[0].mxu0
        %v334 = vadd.f32 %v201, %v333
        %v335 = vpop.f32.mrb[0].mxu0
        %336 = vmatprep.mubr.f32.mxu0 0.0
        %337 = vmatmul.mubr.f32.gmra.mrb[0].mxu0 %v217
        %v338 = vpop.f32.mrb[0].mxu0
        %v339 = vadd.f32 %v201, %v338
        %v340 = vpop.f32.mrb[0].mxu0
        %341 = vmatprep.mubr.f32.mxu0 0.0
        %342 = vmatmul.mubr.f32.gmra.mrb[0].mxu0 %v220
        %v343 = vpop.f32.mrb[0].mxu0
        %v344 = vadd.f32 %v201, %v343
        %v345 = vpop.f32.mrb[0].mxu0
        %346 = vmatprep.mubr.f32.mxu0 0.0
        %347 = vmatmul.mubr.f32.gmra.mrb[0].mxu0 %v223
        %v348 = vpop.f32.mrb[0].mxu0
        %v349 = vadd.f32 %v201, %v348
        %v350 = vpop.f32.mrb[0].mxu0
        %351 = vmatprep.mubr.f32.mxu0 0.0
        %352 = vmatmul.mubr.f32.gmra.mrb[0].mxu0 %v226
        %v353 = vpop.f32.mrb[0].mxu0
        %v354 = vadd.f32 %v201, %v353
        %v355 = vpop.f32.mrb[0].mxu0
        %356 = vmatprep.mubr.f32.mxu0 0.0
        %357 = vmatmul.mubr.f32.gmra.mrb[0].mxu0 %v229
        %v358 = vpop.f32.mrb[0].mxu0
        %v359 = vadd.f32 %v201, %v358
        %v360 = vpop.f32.mrb[0].mxu0
        %361 = vmatprep.mubr.f32.mxu0 0.0
        %362 = vmatmul.mubr.f32.gmra.mrb[0].mxu0 %v232
        %v363 = vpop.f32.mrb[0].mxu0
        %v364 = vadd.f32 %v201, %v363
        %v365 = vpop.f32.mrb[0].mxu0
        %366 = vmatprep.mubr.f32.mxu0 0.0
        %367 = vmatmul.mubr.f32.gmra.mrb[0].mxu0 %v235
        %v368 = vpop.f32.mrb[0].mxu0
        %v369 = vadd.f32 %v201, %v368
        %v370 = vpop.f32.mrb[0].mxu0
        %371 = vmatprep.mubr.f32.mxu0 0.0
        %372 = vmatmul.mubr.f32.gmra.mrb[0].mxu0 %v238
        %v373 = vpop.f32.mrb[0].mxu0
        %v374 = vadd.f32 %v201, %v373
        %v375 = vpop.f32.mrb[0].mxu0
        %376 = vmatprep.mubr.f32.mxu0 0.0
        %377 = vmatmul.mubr.f32.gmra.mrb[0].mxu0 %v241
        %v378 = vpop.f32.mrb[0].mxu0
        %v379 = vadd.f32 %v201, %v378
        %v380 = vpop.f32.mrb[0].mxu0
        %381 = vmatprep.mubr.f32.mxu0 0.0
        %382 = vmatmul.mubr.f32.gmra.mrb[0].mxu0 %v244
        %v383 = vpop.f32.mrb[0].mxu0
        %v384 = vadd.f32 %v201, %v383
        %v385 = vpop.f32.mrb[0].mxu0
        %386 = vmatprep.mubr.f32.mxu0 0.0
        %387 = vmatmul.mubr.f32.gmra.mrb[0].mxu0 %v247
        %v388 = vpop.f32.mrb[0].mxu0
        %v389 = vadd.f32 %v201, %v388
        %v390 = vpop.f32.mrb[0].mxu0
        %391 = vmatprep.mubr.f32.mxu0 0.0
        %392 = vmatmul.mubr.f32.gmra.mrb[0].mxu0 %v250
        %v393 = vpop.f32.mrb[0].mxu0
        %v394 = vadd.f32 %v201, %v393
        %v395 = vpop.f32.mrb[0].mxu0
        %396 = vdwg.mxu0
        %397 = vmax.xlane.f32.xlu0 %v319
        %v398 = vpop.xlane.xlu0 %397
        %399 = vmax.xlane.f32.xlu0 %v324
        %v400 = vpop.xlane.xlu0 %399
        %401 = vmax.xlane.f32.xlu0 %v329
        %v402 = vpop.xlane.xlu0 %401
        %403 = vmax.xlane.f32.xlu0 %v334
        %v404 = vpop.xlane.xlu0 %403
        %405 = vmax.xlane.f32.xlu0 %v339
        %v406 = vpop.xlane.xlu0 %405
        %407 = vmax.xlane.f32.xlu0 %v344
        %v408 = vpop.xlane.xlu0 %407
        %409 = vmax.xlane.f32.xlu0 %v349
        %v410 = vpop.xlane.xlu0 %409
        %411 = vmax.xlane.f32.xlu0 %v354
        %v412 = vpop.xlane.xlu0 %411
        %413 = vmax.xlane.f32.xlu0 %v359
        %v414 = vpop.xlane.xlu0 %413
        %415 = vmax.xlane.f32.xlu0 %v364
        %v416 = vpop.xlane.xlu0 %415
        %417 = vmax.xlane.f32.xlu0 %v369
        %v418 = vpop.xlane.xlu0 %417
        %419 = vmax.xlane.f32.xlu0 %v374
        %v420 = vpop.xlane.xlu0 %419
        %421 = vmax.xlane.f32.xlu0 %v379
        %v422 = vpop.xlane.xlu0 %421
        %423 = vmax.xlane.f32.xlu0 %v384
        %v424 = vpop.xlane.xlu0 %423
        %425 = vmax.xlane.f32.xlu0 %v389
        %v426 = vpop.xlane.xlu0 %425
        %427 = vmax.xlane.f32.xlu0 %v394
        %v428 = vpop.xlane.xlu0 %427
        %v429 = vsub.f32 %v319, %v398
        %v430 = vsub.f32 %v324, %v400
        %v431 = vsub.f32 %v329, %v402
        %v432 = vsub.f32 %v334, %v404
        %v433 = vsub.f32 %v339, %v406
        %v434 = vsub.f32 %v344, %v408
        %v435 = vsub.f32 %v349, %v410
        %v436 = vsub.f32 %v354, %v412
        %v437 = vsub.f32 %v359, %v414
        %v438 = vsub.f32 %v364, %v416
        %v439 = vsub.f32 %v369, %v418
        %v440 = vsub.f32 %v374, %v420
        %v441 = vsub.f32 %v379, %v422
        %v442 = vsub.f32 %v384, %v424
        %v443 = vsub.f32 %v389, %v426
        %v444 = vsub.f32 %v394, %v428
        %v445 = vmul.f32 %v429, 1.442695
        %v446 = vpow.pop %v445
        %v447 = vmul.f32 %v430, 1.442695
        %v448 = vpow.pop %v447
        %v449 = vmul.f32 %v431, 1.442695
        %v450 = vpow.pop %v449
        %v451 = vmul.f32 %v432, 1.442695
        %v452 = vpow.pop %v451
        %v453 = vmul.f32 %v433, 1.442695
        %v454 = vpow.pop %v453
        %v455 = vmul.f32 %v434, 1.442695
        %v456 = vpow.pop %v455
        %v457 = vmul.f32 %v435, 1.442695
        %v458 = vpow.pop %v457
        %v459 = vmul.f32 %v436, 1.442695
        %v460 = vpow.pop %v459
        %v461 = vmul.f32 %v437, 1.442695
        %v462 = vpow.pop %v461
        %v463 = vmul.f32 %v438, 1.442695
        %v464 = vpow.pop %v463
        %v465 = vmul.f32 %v439, 1.442695
        %v466 = vpow.pop %v465
        %v467 = vmul.f32 %v440, 1.442695
        %v468 = vpow.pop %v467
        %v469 = vmul.f32 %v441, 1.442695
        %v470 = vpow.pop %v469
        %v471 = vmul.f32 %v442, 1.442695
        %v472 = vpow.pop %v471
        %v473 = vmul.f32 %v443, 1.442695
        %v474 = vpow.pop %v473
        %v475 = vmul.f32 %v444, 1.442695
        %v476 = vpow.pop %v475
        %477 = vadd.xlane.f32.xlu0 %v446
        %v478 = vpop.xlane.xlu0 %477
        %479 = vadd.xlane.f32.xlu0 %v448
        %v480 = vpop.xlane.xlu0 %479
        %481 = vadd.xlane.f32.xlu0 %v450
        %v482 = vpop.xlane.xlu0 %481
        %483 = vadd.xlane.f32.xlu0 %v452
        %v484 = vpop.xlane.xlu0 %483
        %485 = vadd.xlane.f32.xlu0 %v454
        %v486 = vpop.xlane.xlu0 %485
        %487 = vadd.xlane.f32.xlu0 %v456
        %v488 = vpop.xlane.xlu0 %487
        %489 = vadd.xlane.f32.xlu0 %v458
        %v490 = vpop.xlane.xlu0 %489
        %491 = vadd.xlane.f32.xlu0 %v460
        %v492 = vpop.xlane.xlu0 %491
        %493 = vadd.xlane.f32.xlu0 %v462
        %v494 = vpop.xlane.xlu0 %493
        %495 = vadd.xlane.f32.xlu0 %v464
        %v496 = vpop.xlane.xlu0 %495
        %497 = vadd.xlane.f32.xlu0 %v466
        %v498 = vpop.xlane.xlu0 %497
        %499 = vadd.xlane.f32.xlu0 %v468
        %v500 = vpop.xlane.xlu0 %499
        %501 = vadd.xlane.f32.xlu0 %v470
        %v502 = vpop.xlane.xlu0 %501
        %503 = vadd.xlane.f32.xlu0 %v472
        %v504 = vpop.xlane.xlu0 %503
        %505 = vadd.xlane.f32.xlu0 %v474
        %v506 = vpop.xlane.xlu0 %505
        %507 = vadd.xlane.f32.xlu0 %v476
        %v508 = vpop.xlane.xlu0 %507
        %v509 = vrcp.pop %v478
        %v510 = vmul.f32 %v446, %v509
        %v511 = vrcp.pop %v480
        %v512 = vmul.f32 %v448, %v511
        %v513 = vrcp.pop %v482
        %v514 = vmul.f32 %v450, %v513
        %v515 = vrcp.pop %v484
        %v516 = vmul.f32 %v452, %v515
        %v517 = vrcp.pop %v486
        %v518 = vmul.f32 %v454, %v517
        %v519 = vrcp.pop %v488
        %v520 = vmul.f32 %v456, %v519
        %v521 = vrcp.pop %v490
        %v522 = vmul.f32 %v458, %v521
        %v523 = vrcp.pop %v492
        %v524 = vmul.f32 %v460, %v523
        %v525 = vrcp.pop %v494
        %v526 = vmul.f32 %v462, %v525
        %v527 = vrcp.pop %v496
        %v528 = vmul.f32 %v464, %v527
        %v529 = vrcp.pop %v498
        %v530 = vmul.f32 %v466, %v529
        %v531 = vrcp.pop %v500
        %v532 = vmul.f32 %v468, %v531
        %v533 = vrcp.pop %v502
        %v534 = vmul.f32 %v470, %v533
        %v535 = vrcp.pop %v504
        %v536 = vmul.f32 %v472, %v535
        %v537 = vrcp.pop %v506
        %v538 = vmul.f32 %v474, %v537
        %v539 = vrcp.pop %v508
        %v540 = vmul.f32 %v476, %v539
        %v541 = vmul.f32 %v510, 128.0
        %v542 = vmul.f32 %v512, 128.0
        %v543 = vmul.f32 %v514, 128.0
        %v544 = vmul.f32 %v516, 128.0
        %v545 = vmul.f32 %v518, 128.0
        %v546 = vmul.f32 %v520, 128.0
        %v547 = vmul.f32 %v522, 128.0
        %v548 = vmul.f32 %v524, 128.0
        %v549 = vmul.f32 %v526, 128.0
        %v550 = vmul.f32 %v528, 128.0
        %v551 = vmul.f32 %v530, 128.0
        %v552 = vmul.f32 %v532, 128.0
        %v553 = vmul.f32 %v534, 128.0
        %v554 = vmul.f32 %v536, 128.0
        %v555 = vmul.f32 %v538, 128.0
        %v556 = vmul.f32 %v540, 128.0
        %557 = vst [vmem:[%s164] sm:$0xff] %v541
        %558 = vst [vmem:[%s164 + $0x8] sm:$0xff] %v542
        %559 = vst [vmem:[%s164 + $0x10] sm:$0xff] %v543
        %560 = vst [vmem:[%s164 + $0x18] sm:$0xff] %v544
        %561 = vst [vmem:[%s164 + $0x20] sm:$0xff] %v545
        %562 = vst [vmem:[%s164 + $0x28] sm:$0xff] %v546
        %563 = vst [vmem:[%s164 + $0x30] sm:$0xff] %v547
        %564 = vst [vmem:[%s164 + $0x38] sm:$0xff] %v548
        %565 = vst [vmem:[%s164 + $0x40] sm:$0xff] %v549
        %566 = vst [vmem:[%s164 + $0x48] sm:$0xff] %v550
        %567 = vst [vmem:[%s164 + $0x50] sm:$0xff] %v551
        %568 = vst [vmem:[%s164 + $0x58] sm:$0xff] %v552
        %569 = vst [vmem:[%s164 + $0x60] sm:$0xff] %v553
        %570 = vst [vmem:[%s164 + $0x68] sm:$0xff] %v554
        %571 = vst [vmem:[%s164 + $0x70] sm:$0xff] %v555
        %572 = vst [vmem:[%s164 + $0x78] sm:$0xff] %v556
        %s573 = sand.u32 %s93, 1
        %s574 = scalar_lea.sflag [#allocation3], %s573
        %s575 = sand.u32 %s93, 1
        %s576 = smul.addr %s575, 128
        %s577 = scalar_lea.vmem [#allocation2], %s576
        // Predicated region
        $region33: #{tpu_custom_call.1} parent=31 // pred_check
          %p578 = pneg %p103
        $region34: #{tpu_custom_call.1} parent=31 // pred_check_branch
          %580 = sbr.rel (%p578) target = $region36
        $region35: #{tpu_custom_call.1} parent=31 // pred_region
          %s581 = smul.u32 16, %s17
          %s583 = ssub.s32 2048, 2048
          %584 = vsyncadd %s574, %s583
          %s585 = smul.addr %s581, 128
          %s586 = scalar_lea.hbm %s3, %s585
          %s587 = sshll.u32 %s577, 4
          %s588 = int_to_ptr.vmem [resolvable:$true] %s587
          %593 = dma.vmem_to_hbm [thread:$0]  %s588, 2048, %s586, %s574, 128, 128, 8
        $region36: #{tpu_custom_call.1} parent=31 // pred_fallthru
          _
      $region32: #{tpu_custom_call.1} parent=5 // pred_fallthru
        _
      %p594 = scmp.le.s32.totalorder 2, %s12
      // Predicated region
      $region37: #{tpu_custom_call.1} parent=5 // pred_check
        %p595 = pneg %p594
      $region38: #{tpu_custom_call.1} parent=5 // pred_check_branch
        %597 = sbr.rel (%p595) target = $region40
      $region39: #{tpu_custom_call.1} parent=5 // pred_region
        %s598 = ssub.s32 %s12, 2
        // Predicated region
        $region41: #{tpu_custom_call.1} parent=39 // pred_check
          %p599 = pneg %p109
        $region42: #{tpu_custom_call.1} parent=39 // pred_check_branch
          %601 = sbr.rel (%p599) target = $region44
        $region43: #{tpu_custom_call.1} parent=39 // pred_region
          %s602 = sand.u32 %s94, 1
          %s603 = scalar_lea.sflag [#allocation3], %s602
          %s604 = sand.u32 %s94, 1
          %s605 = smul.addr %s604, 128
          %s606 = scalar_lea.vmem [#allocation2], %s605
          %607 = dma.done %s603, 2048
        $region44: #{tpu_custom_call.1} parent=39 // pred_fallthru
          _
      $region40: #{tpu_custom_call.1} parent=5 // pred_fallthru
        _
    $region6: #{tpu_custom_call.1} parent=1 // loop_footer
      %s16 = sadd.s32 1, %s12
    $region7: #{tpu_custom_call.1} parent=1 // loop_footer_branch
      %11 = sbr.rel target = $region3
    $region8: #{tpu_custom_call.1} parent=1 // loop_exit
      _
    %608 = vsyncpa [#allocation3], 1
    %s609 = scalar_lea.sflag [#allocation3], 1
    %610 = vsyncpa %s609, 1

</llo_original>
